<compile_context>
chip_gen: v7x
topology: tpu7x:2x2x1
jax: 0.10.0
libtpu: 0.0.40
codegen_flags: <defaults>
</compile_context>

<pallas_src>
import functools

import jax
import jax.numpy as jnp
from jax import lax
from jax.experimental import pallas as pl
from jax.experimental.pallas import tpu as pltpu

KERNEL_SIZE = 7
PAD = KERNEL_SIZE // 2

_LANE = 128
_BLOCK_BUDGET = 2 * 1024 * 1024  # bytes per x block (conservative for v5e VMEM)


# ----------------------------------------------------------------------------
# pass 1: fused per-column mean / max over the channel axis
# ----------------------------------------------------------------------------
def stats_kernel(x_ref, s_ref):
    """x_ref: (B, C, Tt) native dtype ; s_ref: (B, 2, Tt) f32 [mean; max]."""
    xv = x_ref[...]                                       # single load feeds both reductions
    c = x_ref.shape[1]
    mean = jnp.sum(xv, axis=1, keepdims=True, dtype=jnp.float32) * jnp.float32(1.0 / c)
    mx = jnp.max(xv, axis=1, keepdims=True).astype(jnp.float32)
    s_ref[:, 0:1, :] = mean
    s_ref[:, 1:2, :] = mx


# ----------------------------------------------------------------------------
# pass 2: Conv1d(2 -> 1, k=7, pad=3, bias=False) + sigmoid on full-T stats rows
# ----------------------------------------------------------------------------
def conv_gate_kernel(w_ref, sp_ref, g_ref):
    """w_ref: SMEM (2, K) ; sp_ref: (1, 2, T+2*PAD) f32 (zero padded) ; g_ref: (1, 1, T) f32."""
    t_len = g_ref.shape[2]
    sp = sp_ref[0]                                        # (2, T + 2*PAD)
    acc = jnp.zeros((1, t_len), dtype=jnp.float32)
    for j in range(KERNEL_SIZE):                          # 7 taps x 2 channels, static slices
        acc = acc + w_ref[0, j] * sp[0:1, j:j + t_len] \
                  + w_ref[1, j] * sp[1:2, j:j + t_len]
    g_ref[0] = jax.nn.sigmoid(acc)


# ----------------------------------------------------------------------------
# pass 3: out = gate * x, native dtype, streaming
# ----------------------------------------------------------------------------
def apply_kernel(g_ref, x_ref, o_ref):
    """g_ref: (B, 1, Tt) f32 ; x_ref/o_ref: (B, C, Tt) native dtype."""
    xv = x_ref[...]
    gate = g_ref[...].astype(xv.dtype)                    # only the (B,1,Tt) gate is cast
    o_ref[...] = xv * gate                                # broadcast over channels


# ----------------------------------------------------------------------------
# wrapper
# ----------------------------------------------------------------------------
def _choose_tiles(bs, C, T, itemsize):
    """Pick (b_tile, t_tile): largest lane-aligned T tile whose x slab fits the
    per-block budget, then pack as many batch rows as still fit."""
    if T % _LANE != 0:
        t_tile = T                                        # full-extent block is always legal
    else:
        n = T // _LANE
        t_tile = _LANE
        for k in range(1, n + 1):
            if n % k == 0 and C * k * _LANE * itemsize <= _BLOCK_BUDGET:
                t_tile = k * _LANE
    row_bytes = C * t_tile * itemsize
    b_tile = 1
    for b in range(1, bs + 1):
        if bs % b == 0 and b * row_bytes <= _BLOCK_BUDGET:
            b_tile = b
    return b_tile, t_tile


@functools.partial(jax.jit, static_argnames=("t_tile", "b_tile"))
def spatial_attention(x, w, t_tile=None, b_tile=None):
    """x: [bs, C, T] ; w: [1, 2, KERNEL_SIZE] Conv1d weight -> [bs, C, T]."""
    bs, C, T = x.shape
    itemsize = jnp.dtype(x.dtype).itemsize
    auto_b, auto_t = _choose_tiles(bs, C, T, itemsize)
    t_tile = auto_t if t_tile is None else t_tile
    b_tile = auto_b if b_tile is None else b_tile
    assert bs % b_tile == 0
    assert T % t_tile == 0 and (t_tile == T or t_tile % _LANE == 0)

    w2 = w.reshape(2, KERNEL_SIZE).astype(jnp.float32)

    grid2 = (bs // b_tile, T // t_tile)
    par2 = pltpu.CompilerParams(dimension_semantics=("parallel", "parallel"))

    # ---- pass 1: stats ------------------------------------------------------
    stats = pl.pallas_call(
        stats_kernel,
        out_shape=jax.ShapeDtypeStruct((bs, 2, T), jnp.float32),
        grid_spec=pltpu.PrefetchScalarGridSpec(
            num_scalar_prefetch=0,
            grid=grid2,
            in_specs=[pl.BlockSpec((b_tile, C, t_tile), lambda b, t: (b, 0, t))],
            out_specs=pl.BlockSpec((b_tile, 2, t_tile), lambda b, t: (b, 0, t)),
        ),
        compiler_params=par2,
    )(x)

    # Zero-pad the tiny (bs, 2, T) rows once in plain XLA so the conv kernel
    # needs only static in-bounds slices (correct regardless of T tiling).
    stats_p = jnp.pad(stats, ((0, 0), (0, 0), (PAD, PAD)))

    # ---- pass 2: conv + sigmoid -> gate -------------------------------------
    gate = pl.pallas_call(
        conv_gate_kernel,
        out_shape=jax.ShapeDtypeStruct((bs, 1, T), jnp.float32),
        grid_spec=pltpu.PrefetchScalarGridSpec(
            num_scalar_prefetch=0,
            grid=(bs,),
            in_specs=[
                pl.BlockSpec(memory_space=pltpu.MemorySpace.SMEM),        # weights
                pl.BlockSpec((1, 2, T + 2 * PAD), lambda b: (b, 0, 0)),   # padded stats
            ],
            out_specs=pl.BlockSpec((1, 1, T), lambda b: (b, 0, 0)),
        ),
        compiler_params=pltpu.CompilerParams(dimension_semantics=("parallel",)),
    )(w2, stats_p)

    # ---- pass 3: gate * x ----------------------------------------------------
    out = pl.pallas_call(
        apply_kernel,
        out_shape=jax.ShapeDtypeStruct((bs, C, T), x.dtype),
        grid_spec=pltpu.PrefetchScalarGridSpec(
            num_scalar_prefetch=0,
            grid=grid2,
            in_specs=[
                pl.BlockSpec((b_tile, 1, t_tile), lambda b, t: (b, 0, t)),  # gate
                pl.BlockSpec((b_tile, C, t_tile), lambda b, t: (b, 0, t)),  # x
            ],
            out_specs=pl.BlockSpec((b_tile, C, t_tile), lambda b, t: (b, 0, t)),
        ),
        compiler_params=par2,
    )(gate, x)

    return out


def reference(x, w):
    """Pure-JAX reference matching the PyTorch module."""
    avg_out = jnp.mean(x, axis=1, keepdims=True)
    max_out = jnp.max(x, axis=1, keepdims=True)
    out = jnp.concatenate([avg_out, max_out], axis=1)                 # [bs, 2, T]
    out = lax.conv_general_dilated(
        out, w, window_strides=(1,), padding=[(PAD, PAD)],
        dimension_numbers=("NCH", "OIH", "NCH"))                      # [bs, 1, T]
    out = jax.nn.sigmoid(out)
    return out * x


if __name__ == "__main__":
    key = jax.random.PRNGKey(0)
    kx, kw = jax.random.split(key)

    bs, C, T = 2, 4, 256
    x = jax.random.normal(kx, (bs, C, T), dtype=jnp.float32)
    # Deterministic Conv1d weight, shape [out_chan=1, in_chan=2, kernel_size=7]
    w = (jax.random.uniform(kw, (1, 2, KERNEL_SIZE), dtype=jnp.float32) - 0.5) * 0.5

    ref = reference(x, w)

    # default (auto-chosen) tiling: whole problem packed into one block
    out = jax.block_until_ready(spatial_attention(x, w))
    assert out.shape == (bs, C, T)
    assert jnp.allclose(out, ref, atol=1e-5, rtol=1e-5), (
        f"max abs diff {jnp.max(jnp.abs(out - ref))}")

    # explicitly exercise the tiled path (T tiled in 128-lane blocks, 1 batch row/block)
    out_tiled = jax.block_until_ready(spatial_attention(x, w, t_tile=128, b_tile=1))
    assert jnp.allclose(out_tiled, ref, atol=1e-5, rtol=1e-5), (
        f"max abs diff {jnp.max(jnp.abs(out_tiled - ref))}")

    print("KERNEL_OK")
</pallas_src>

<mosaic_0001>
module attributes {stable_mosaic.version = 11 : i64} {
  func.func @apply_kernel(%arg0: i32, %arg1: i32, %arg2: memref<2x1x256xf32, #tpu.memory_space<vmem>>, %arg3: memref<2x4x256xf32, #tpu.memory_space<vmem>>, %arg4: memref<2x4x256xf32, #tpu.memory_space<vmem>>) attributes {dimension_semantics = [#tpu.dimension_semantics<parallel>, #tpu.dimension_semantics<parallel>], iteration_bounds = array<i64: 1, 1>, scalar_prefetch = 0 : i64, scratch_operands = 0 : i64, tpu.core_type = #tpu.core_type<tc>, window_params = [{transform_indices = @transform_0, window_bounds = array<i64: 2, 1, 256>}, {transform_indices = @transform_1, window_bounds = array<i64: 2, 4, 256>}, {transform_indices = @transform_2, window_bounds = array<i64: 2, 4, 256>}]} {
    %c0 = arith.constant 0 : index
    %c0_0 = arith.constant 0 : index
    %c0_1 = arith.constant 0 : index
    %0 = vector.load %arg3[%c0, %c0_0, %c0_1] : memref<2x4x256xf32, #tpu.memory_space<vmem>>, vector<2x4x256xf32>
    %c0_2 = arith.constant 0 : index
    %c0_3 = arith.constant 0 : index
    %c0_4 = arith.constant 0 : index
    %1 = vector.load %arg2[%c0_2, %c0_3, %c0_4] : memref<2x1x256xf32, #tpu.memory_space<vmem>>, vector<2x1x256xf32>
    %2 = vector.broadcast %1 : vector<2x1x256xf32> to vector<2x4x256xf32>
    %3 = arith.mulf %0, %2 : vector<2x4x256xf32>
    %c0_5 = arith.constant 0 : index
    %c0_6 = arith.constant 0 : index
    %c0_7 = arith.constant 0 : index
    %4 = vector.load %arg4[%c0_5, %c0_6, %c0_7] : memref<2x4x256xf32, #tpu.memory_space<vmem>>, vector<2x4x256xf32>
    tpu.vector_store %arg4[%c0_5, %c0_6, %c0_7], %3 {strides = array<i32>} : memref<2x4x256xf32, #tpu.memory_space<vmem>>, vector<2x4x256xf32>,
    return
  }
  func.func @transform_0(%arg0: i32, %arg1: i32) -> (i32, i32, i32) {
    %c0_i32 = arith.constant 0 : i32
    %c0_i32_0 = arith.constant 0 : i32
    return %arg0, %c0_i32, %arg1 : i32, i32, i32
  }
  func.func @transform_1(%arg0: i32, %arg1: i32) -> (i32, i32, i32) {
    %c0_i32 = arith.constant 0 : i32
    %c0_i32_0 = arith.constant 0 : i32
    return %arg0, %c0_i32, %arg1 : i32, i32, i32
  }
  func.func @transform_2(%arg0: i32, %arg1: i32) -> (i32, i32, i32) {
    %c0_i32 = arith.constant 0 : i32
    %c0_i32_0 = arith.constant 0 : i32
    return %arg0, %c0_i32, %arg1 : i32, i32, i32
  }
}

module attributes {stable_mosaic.version = 11 : i64} {
  func.func @stats_kernel(%arg0: i32, %arg1: i32, %arg2: memref<2x4x256xf32, #tpu.memory_space<vmem>>, %arg3: memref<2x2x256xf32, #tpu.memory_space<vmem>>) attributes {dimension_semantics = [#tpu.dimension_semantics<parallel>, #tpu.dimension_semantics<parallel>], iteration_bounds = array<i64: 1, 1>, scalar_prefetch = 0 : i64, scratch_operands = 0 : i64, tpu.core_type = #tpu.core_type<tc>, window_params = [{transform_indices = @transform_0, window_bounds = array<i64: 2, 4, 256>}, {transform_indices = @transform_1, window_bounds = array<i64: 2, 2, 256>}]} {
    %c0 = arith.constant 0 : index
    %c0_0 = arith.constant 0 : index
    %c0_1 = arith.constant 0 : index
    %0 = vector.load %arg2[%c0, %c0_0, %c0_1] : memref<2x4x256xf32, #tpu.memory_space<vmem>>, vector<2x4x256xf32>
    %cst = arith.constant dense<0.000000e+00> : vector<2x256xf32>
    %1 = vector.multi_reduction <add>, %0, %cst [1] : vector<2x4x256xf32> to vector<2x256xf32>
    %2 = vector.shape_cast %1 : vector<2x256xf32> to vector<2x1x256xf32>
    %cst_2 = arith.constant 2.500000e-01 : f32
    %3 = vector.broadcast %cst_2 : f32 to vector<2x1x256xf32>
    %4 = arith.mulf %2, %3 : vector<2x1x256xf32>
    %cst_3 = arith.constant dense<0xFF800000> : vector<2x256xf32>
    %5 = vector.multi_reduction <maximumf>, %0, %cst_3 [1] : vector<2x4x256xf32> to vector<2x256xf32>
    %6 = vector.shape_cast %5 : vector<2x256xf32> to vector<2x1x256xf32>
    %c0_4 = arith.constant 0 : index
    %c0_5 = arith.constant 0 : index
    %c0_6 = arith.constant 0 : index
    %7 = vector.load %arg3[%c0_4, %c0_5, %c0_6] : memref<2x2x256xf32, #tpu.memory_space<vmem>>, vector<2x1x256xf32>
    tpu.vector_store %arg3[%c0_4, %c0_5, %c0_6], %4 {strides = array<i32>} : memref<2x2x256xf32, #tpu.memory_space<vmem>>, vector<2x1x256xf32>,
    %c0_7 = arith.constant 0 : index
    %c1 = arith.constant 1 : index
    %c0_8 = arith.constant 0 : index
    %8 = vector.load %arg3[%c0_7, %c1, %c0_8] : memref<2x2x256xf32, #tpu.memory_space<vmem>>, vector<2x1x256xf32>
    tpu.vector_store %arg3[%c0_7, %c1, %c0_8], %6 {strides = array<i32>} : memref<2x2x256xf32, #tpu.memory_space<vmem>>, vector<2x1x256xf32>,
    return
  }
  func.func @transform_0(%arg0: i32, %arg1: i32) -> (i32, i32, i32) {
    %c0_i32 = arith.constant 0 : i32
    %c0_i32_0 = arith.constant 0 : i32
    return %arg0, %c0_i32, %arg1 : i32, i32, i32
  }
  func.func @transform_1(%arg0: i32, %arg1: i32) -> (i32, i32, i32) {
    %c0_i32 = arith.constant 0 : i32
    %c0_i32_0 = arith.constant 0 : i32
    return %arg0, %c0_i32, %arg1 : i32, i32, i32
  }
}

module attributes {stable_mosaic.version = 11 : i64} {
  func.func @conv_gate_kernel(%arg0: i32, %arg1: memref<2x7xf32, #tpu.memory_space<smem>>, %arg2: memref<1x2x262xf32, #tpu.memory_space<vmem>>, %arg3: memref<1x1x256xf32, #tpu.memory_space<vmem>>) attributes {dimension_semantics = [#tpu.dimension_semantics<parallel>], iteration_bounds = array<i64: 2>, scalar_prefetch = 0 : i64, scratch_operands = 0 : i64, tpu.core_type = #tpu.core_type<tc>, window_params = [{transform_indices = @transform_0, window_bounds = array<i64: 2, 7>}, {transform_indices = @transform_1, window_bounds = array<i64: 1, 2, 262>}, {transform_indices = @transform_2, window_bounds = array<i64: 1, 1, 256>}]} {
    %c0 = arith.constant 0 : index
    %c0_0 = arith.constant 0 : index
    %c0_1 = arith.constant 0 : index
    %0 = vector.load %arg2[%c0, %c0_0, %c0_1] : memref<1x2x262xf32, #tpu.memory_space<vmem>>, vector<1x2x262xf32>
    %1 = vector.shape_cast %0 : vector<1x2x262xf32> to vector<2x262xf32>
    %cst = arith.constant 0.000000e+00 : f32
    %2 = vector.broadcast %cst : f32 to vector<1x256xf32>
    %c0_2 = arith.constant 0 : index
    %c0_3 = arith.constant 0 : index
    %3 = memref.load %arg1[%c0_2, %c0_3] : memref<2x7xf32, #tpu.memory_space<smem>>
    %4 = vector.extract_strided_slice %1 {offsets = [0, 0], sizes = [1, 256], strides = [1, 1]} : vector<2x262xf32> to vector<1x256xf32>
    %5 = vector.broadcast %3 : f32 to vector<1x256xf32>
    %6 = arith.mulf %5, %4 : vector<1x256xf32>
    %7 = arith.addf %2, %6 : vector<1x256xf32>
    %c1 = arith.constant 1 : index
    %c0_4 = arith.constant 0 : index
    %8 = memref.load %arg1[%c1, %c0_4] : memref<2x7xf32, #tpu.memory_space<smem>>
    %9 = vector.extract_strided_slice %1 {offsets = [1, 0], sizes = [1, 256], strides = [1, 1]} : vector<2x262xf32> to vector<1x256xf32>
    %10 = vector.broadcast %8 : f32 to vector<1x256xf32>
    %11 = arith.mulf %10, %9 : vector<1x256xf32>
    %12 = arith.addf %7, %11 : vector<1x256xf32>
    %c0_5 = arith.constant 0 : index
    %c1_6 = arith.constant 1 : index
    %13 = memref.load %arg1[%c0_5, %c1_6] : memref<2x7xf32, #tpu.memory_space<smem>>
    %14 = vector.extract_strided_slice %1 {offsets = [0, 1], sizes = [1, 256], strides = [1, 1]} : vector<2x262xf32> to vector<1x256xf32>
    %15 = vector.broadcast %13 : f32 to vector<1x256xf32>
    %16 = arith.mulf %15, %14 : vector<1x256xf32>
    %17 = arith.addf %12, %16 : vector<1x256xf32>
    %c1_7 = arith.constant 1 : index
    %c1_8 = arith.constant 1 : index
    %18 = memref.load %arg1[%c1_7, %c1_8] : memref<2x7xf32, #tpu.memory_space<smem>>
    %19 = vector.extract_strided_slice %1 {offsets = [1, 1], sizes = [1, 256], strides = [1, 1]} : vector<2x262xf32> to vector<1x256xf32>
    %20 = vector.broadcast %18 : f32 to vector<1x256xf32>
    %21 = arith.mulf %20, %19 : vector<1x256xf32>
    %22 = arith.addf %17, %21 : vector<1x256xf32>
    %c0_9 = arith.constant 0 : index
    %c2 = arith.constant 2 : index
    %23 = memref.load %arg1[%c0_9, %c2] : memref<2x7xf32, #tpu.memory_space<smem>>
    %24 = vector.extract_strided_slice %1 {offsets = [0, 2], sizes = [1, 256], strides = [1, 1]} : vector<2x262xf32> to vector<1x256xf32>
    %25 = vector.broadcast %23 : f32 to vector<1x256xf32>
    %26 = arith.mulf %25, %24 : vector<1x256xf32>
    %27 = arith.addf %22, %26 : vector<1x256xf32>
    %c1_10 = arith.constant 1 : index
    %c2_11 = arith.constant 2 : index
    %28 = memref.load %arg1[%c1_10, %c2_11] : memref<2x7xf32, #tpu.memory_space<smem>>
    %29 = vector.extract_strided_slice %1 {offsets = [1, 2], sizes = [1, 256], strides = [1, 1]} : vector<2x262xf32> to vector<1x256xf32>
    %30 = vector.broadcast %28 : f32 to vector<1x256xf32>
    %31 = arith.mulf %30, %29 : vector<1x256xf32>
    %32 = arith.addf %27, %31 : vector<1x256xf32>
    %c0_12 = arith.constant 0 : index
    %c3 = arith.constant 3 : index
    %33 = memref.load %arg1[%c0_12, %c3] : memref<2x7xf32, #tpu.memory_space<smem>>
    %34 = vector.extract_strided_slice %1 {offsets = [0, 3], sizes = [1, 256], strides = [1, 1]} : vector<2x262xf32> to vector<1x256xf32>
    %35 = vector.broadcast %33 : f32 to vector<1x256xf32>
    %36 = arith.mulf %35, %34 : vector<1x256xf32>
    %37 = arith.addf %32, %36 : vector<1x256xf32>
    %c1_13 = arith.constant 1 : index
    %c3_14 = arith.constant 3 : index
    %38 = memref.load %arg1[%c1_13, %c3_14] : memref<2x7xf32, #tpu.memory_space<smem>>
    %39 = vector.extract_strided_slice %1 {offsets = [1, 3], sizes = [1, 256], strides = [1, 1]} : vector<2x262xf32> to vector<1x256xf32>
    %40 = vector.broadcast %38 : f32 to vector<1x256xf32>
    %41 = arith.mulf %40, %39 : vector<1x256xf32>
    %42 = arith.addf %37, %41 : vector<1x256xf32>
    %c0_15 = arith.constant 0 : index
    %c4 = arith.constant 4 : index
    %43 = memref.load %arg1[%c0_15, %c4] : memref<2x7xf32, #tpu.memory_space<smem>>
    %44 = vector.extract_strided_slice %1 {offsets = [0, 4], sizes = [1, 256], strides = [1, 1]} : vector<2x262xf32> to vector<1x256xf32>
    %45 = vector.broadcast %43 : f32 to vector<1x256xf32>
    %46 = arith.mulf %45, %44 : vector<1x256xf32>
    %47 = arith.addf %42, %46 : vector<1x256xf32>
    %c1_16 = arith.constant 1 : index
    %c4_17 = arith.constant 4 : index
    %48 = memref.load %arg1[%c1_16, %c4_17] : memref<2x7xf32, #tpu.memory_space<smem>>
    %49 = vector.extract_strided_slice %1 {offsets = [1, 4], sizes = [1, 256], strides = [1, 1]} : vector<2x262xf32> to vector<1x256xf32>
    %50 = vector.broadcast %48 : f32 to vector<1x256xf32>
    %51 = arith.mulf %50, %49 : vector<1x256xf32>
    %52 = arith.addf %47, %51 : vector<1x256xf32>
    %c0_18 = arith.constant 0 : index
    %c5 = arith.constant 5 : index
    %53 = memref.load %arg1[%c0_18, %c5] : memref<2x7xf32, #tpu.memory_space<smem>>
    %54 = vector.extract_strided_slice %1 {offsets = [0, 5], sizes = [1, 256], strides = [1, 1]} : vector<2x262xf32> to vector<1x256xf32>
    %55 = vector.broadcast %53 : f32 to vector<1x256xf32>
    %56 = arith.mulf %55, %54 : vector<1x256xf32>
    %57 = arith.addf %52, %56 : vector<1x256xf32>
    %c1_19 = arith.constant 1 : index
    %c5_20 = arith.constant 5 : index
    %58 = memref.load %arg1[%c1_19, %c5_20] : memref<2x7xf32, #tpu.memory_space<smem>>
    %59 = vector.extract_strided_slice %1 {offsets = [1, 5], sizes = [1, 256], strides = [1, 1]} : vector<2x262xf32> to vector<1x256xf32>
    %60 = vector.broadcast %58 : f32 to vector<1x256xf32>
    %61 = arith.mulf %60, %59 : vector<1x256xf32>
    %62 = arith.addf %57, %61 : vector<1x256xf32>
    %c0_21 = arith.constant 0 : index
    %c6 = arith.constant 6 : index
    %63 = memref.load %arg1[%c0_21, %c6] : memref<2x7xf32, #tpu.memory_space<smem>>
    %64 = vector.extract_strided_slice %1 {offsets = [0, 6], sizes = [1, 256], strides = [1, 1]} : vector<2x262xf32> to vector<1x256xf32>
    %65 = vector.broadcast %63 : f32 to vector<1x256xf32>
    %66 = arith.mulf %65, %64 : vector<1x256xf32>
    %67 = arith.addf %62, %66 : vector<1x256xf32>
    %c1_22 = arith.constant 1 : index
    %c6_23 = arith.constant 6 : index
    %68 = memref.load %arg1[%c1_22, %c6_23] : memref<2x7xf32, #tpu.memory_space<smem>>
    %69 = vector.extract_strided_slice %1 {offsets = [1, 6], sizes = [1, 256], strides = [1, 1]} : vector<2x262xf32> to vector<1x256xf32>
    %70 = vector.broadcast %68 : f32 to vector<1x256xf32>
    %71 = arith.mulf %70, %69 : vector<1x256xf32>
    %72 = arith.addf %67, %71 : vector<1x256xf32>
    %73 = arith.negf %72 : vector<1x256xf32>
    %74 = math.exp %73 : vector<1x256xf32>
    %cst_24 = arith.constant 1.000000e+00 : f32
    %75 = vector.broadcast %cst_24 : f32 to vector<1x256xf32>
    %76 = arith.addf %75, %74 : vector<1x256xf32>
    %77 = arith.divf %75, %76 : vector<1x256xf32>
    %c0_25 = arith.constant 0 : index
    %c0_26 = arith.constant 0 : index
    %c0_27 = arith.constant 0 : index
    %78 = vector.load %arg3[%c0_25, %c0_26, %c0_27] : memref<1x1x256xf32, #tpu.memory_space<vmem>>, vector<1x1x256xf32>
    %79 = vector.shape_cast %78 : vector<1x1x256xf32> to vector<1x256xf32>
    %80 = vector.shape_cast %77 : vector<1x256xf32> to vector<1x1x256xf32>
    tpu.vector_store %arg3[%c0_25, %c0_26, %c0_27], %80 {strides = array<i32>} : memref<1x1x256xf32, #tpu.memory_space<vmem>>, vector<1x1x256xf32>,
    return
  }
  func.func @transform_0(%arg0: i32) -> (i32, i32) {
    %c0_i32 = arith.constant 0 : i32
    %c0_i32_0 = arith.constant 0 : i32
    %c0_i32_1 = arith.constant 0 : i32
    return %c0_i32, %c0_i32_0 : i32, i32
  }
  func.func @transform_1(%arg0: i32) -> (i32, i32, i32) {
    %c0_i32 = arith.constant 0 : i32
    %c0_i32_0 = arith.constant 0 : i32
    %c0_i32_1 = arith.constant 0 : i32
    return %arg0, %c0_i32, %c0_i32_0 : i32, i32, i32
  }
  func.func @transform_2(%arg0: i32) -> (i32, i32, i32) {
    %c0_i32 = arith.constant 0 : i32
    %c0_i32_0 = arith.constant 0 : i32
    %c0_i32_1 = arith.constant 0 : i32
    return %arg0, %c0_i32, %c0_i32_0 : i32, i32, i32
  }
}

</mosaic_0001>

<llo_original>
// kernel: spatial_attention.3
$region0: #{spatial_attention.3}
  #allocation0 [shape = 'u32[]', space=smem, size = 0x4, offset = 0x4, fixed_abs, tag = 'smem constant byte address 0x4 - core index']
  #allocation1 [shape = 'u32[144,128]{1,0:T(1,128)}', space=vmem, size = 0x12000, scoped, tag = 'internal scratch']
  %s0 = inlined_call_operand.hbm [shape: f32[2,4,256], index: 0, kind: input, shape index: {}]
  %s1 = inlined_call_operand.vmem [shape: f32[2,2,256], index: 1, kind: output, shape index: {}]
  %s2 = sld [smem:[#allocation0]]
  $region18: #{spatial_attention.3} parent=0
    _
  %s4 = ssub.s32 1, %s2
  %s5 = scalar_select 0, %s4, %s2
  $region1: #{spatial_attention.3} parent=0
    #allocation2 [shape = 'u8[8192]{0}', space=vmem, size = 0x2000, scoped, tag = 'input window, operand 0, single buffered']
    #allocation3 [shape = 's32[1]{0}', space=sflag, size = 0x4, scoped, tag = 'scoped memory for spatial_attention.3']
    %6 = vsyncpa [#allocation3], 0
    // Predicated region
    $region2: #{spatial_attention.3} parent=1 // pred_check
      _
    $region3: #{spatial_attention.3} parent=1 // pred_check_branch
      %8 = sbr.rel (0) target = $region5
    $region4: #{spatial_attention.3} parent=1 // pred_region
      %s10 = ssub.s32 256, 256
      %11 = vsyncadd [#allocation3], %s10
      %s12 = sshll.u32 [#allocation2], 4
      %s13 = int_to_ptr.vmem [resolvable:$true] %s12
      %18 = dma.hbm_to_vmem [thread:$0]  %s0, 256, %s13, [#allocation3], 128, 128, 8
    $region5: #{spatial_attention.3} parent=1 // pred_fallthru
      _
    // Predicated region
    $region6: #{spatial_attention.3} parent=1 // pred_check
      _
    $region7: #{spatial_attention.3} parent=1 // pred_check_branch
      %20 = sbr.rel (0) target = $region9
    $region8: #{spatial_attention.3} parent=1 // pred_region
      %21 = dma.done [#allocation3], 256
    $region9: #{spatial_attention.3} parent=1 // pred_fallthru
      _
    %v22 = vld [vmem:[#allocation2] sm:$0xff]
    %v23 = vld [vmem:[#allocation2 + $0x8] sm:$0xff]
    %v26 = vcombine.high %v22, %v22
    %v27 = vcombine.high %v23, %v23
    %vm30 = vcmask 1043456
    %v31 = vsel %vm30, %v22, 0.0
    %v32 = vrot.slane %v31, 4
    %v33 = vadd.f32 %v31, %v32
    %v34 = vrot.slane %v33, 2
    %v35 = vadd.f32 %v33, %v34
    %v36 = vrot.slane %v35, 1
    %v37 = vadd.f32 %v35, %v36
    %v38 = vsel %vm30, %v26, 0.0
    %v39 = vrot.slane %v38, 4
    %v40 = vadd.f32 %v38, %v39
    %v41 = vrot.slane %v40, 2
    %v42 = vadd.f32 %v40, %v41
    %v43 = vrot.slane %v42, 1
    %v44 = vadd.f32 %v42, %v43
    %v45 = vsel %vm30, %v23, 0.0
    %v46 = vrot.slane %v45, 4
    %v47 = vadd.f32 %v45, %v46
    %v48 = vrot.slane %v47, 2
    %v49 = vadd.f32 %v47, %v48
    %v50 = vrot.slane %v49, 1
    %v51 = vadd.f32 %v49, %v50
    %v52 = vsel %vm30, %v27, 0.0
    %v53 = vrot.slane %v52, 4
    %v54 = vadd.f32 %v52, %v53
    %v55 = vrot.slane %v54, 2
    %v56 = vadd.f32 %v54, %v55
    %v57 = vrot.slane %v56, 1
    %v58 = vadd.f32 %v56, %v57
    %v59 = vmul.f32 %v37, 0.25
    %v60 = vmul.f32 %v44, 0.25
    %v61 = vmul.f32 %v51, 0.25
    %v62 = vmul.f32 %v58, 0.25
    %v63 = vsel %vm30, %v22, -inf
    %v64 = vrot.slane %v63, 4
    %v65 = vmax.f32 %v63, %v64
    %v66 = vrot.slane %v65, 2
    %v67 = vmax.f32 %v65, %v66
    %v68 = vrot.slane %v67, 1
    %v69 = vmax.f32 %v67, %v68
    %v70 = vsel %vm30, %v26, -inf
    %v71 = vrot.slane %v70, 4
    %v72 = vmax.f32 %v70, %v71
    %v73 = vrot.slane %v72, 2
    %v74 = vmax.f32 %v72, %v73
    %v75 = vrot.slane %v74, 1
    %v76 = vmax.f32 %v74, %v75
    %v77 = vsel %vm30, %v23, -inf
    %v78 = vrot.slane %v77, 4
    %v79 = vmax.f32 %v77, %v78
    %v80 = vrot.slane %v79, 2
    %v81 = vmax.f32 %v79, %v80
    %v82 = vrot.slane %v81, 1
    %v83 = vmax.f32 %v81, %v82
    %v84 = vsel %vm30, %v27, -inf
    %v85 = vrot.slane %v84, 4
    %v86 = vmax.f32 %v84, %v85
    %v87 = vrot.slane %v86, 2
    %v88 = vmax.f32 %v86, %v87
    %v89 = vrot.slane %v88, 1
    %v90 = vmax.f32 %v88, %v89
    %v95 = vcombine.low %v59, %v60
    %v97 = vunpack.c.l.s4 1966171168
    %v98 = vunpack.c.0.s8 %v97
    %v99 = vlaneseq
    %v100 = vshrl.u32 %v99, 7
    %v101 = vsub.s32 %v98, %v100
    %v102 = vrot.slane %v95, %v101
    %v104 = vunpack.c.l.s4 1966171168
    %v105 = vunpack.c.0.s8 %v104
    %v106 = vlaneseq
    %v107 = vshrl.u32 %v106, 7
    %v108 = vsub.s32 %v105, %v107
    %v109 = vrot.slane %v102, %v108
    %v110 = vcombine.low %v61, %v62
    %v112 = vunpack.c.l.s4 1966171168
    %v113 = vunpack.c.0.s8 %v112
    %v114 = vlaneseq
    %v115 = vshrl.u32 %v114, 7
    %v116 = vsub.s32 %v113, %v115
    %v117 = vrot.slane %v110, %v116
    %v119 = vunpack.c.l.s4 1966171168
    %v120 = vunpack.c.0.s8 %v119
    %v121 = vlaneseq
    %v122 = vshrl.u32 %v121, 7
    %v123 = vsub.s32 %v120, %v122
    %v124 = vrot.slane %v117, %v123
    %v127 = vlaneseq
    %vm128 = vcmp.ge.s32.totalorder %v127, 0
    %vm129 = vcmp.lt.s32.totalorder %v127, 256
    %vm130 = vmand %vm128, %vm129
    %131 = vst.msk [vmem:[%s1] ss:$2 sm:$0x3] %vm130, %v109
    %s132 = scalar_lea.vmem %s1, 4
    %133 = vst.msk [vmem:[%s132] ss:$2 sm:$0x3] %vm130, %v124
    %v138 = vcombine.low %v69, %v76
    %v140 = vunpack.c.l.s4 1966171168
    %v141 = vunpack.c.0.s8 %v140
    %v142 = vlaneseq
    %v143 = vshrl.u32 %v142, 7
    %v144 = vsub.s32 %v141, %v143
    %v145 = vrot.slane %v138, %v144
    %v147 = vunpack.c.l.s4 1966171168
    %v148 = vunpack.c.0.s8 %v147
    %v149 = vlaneseq
    %v150 = vshrl.u32 %v149, 7
    %v151 = vsub.s32 %v148, %v150
    %v152 = vrot.slane %v145, %v151
    %v153 = vcombine.low %v83, %v90
    %v155 = vunpack.c.l.s4 1966171168
    %v156 = vunpack.c.0.s8 %v155
    %v157 = vlaneseq
    %v158 = vshrl.u32 %v157, 7
    %v159 = vsub.s32 %v156, %v158
    %v160 = vrot.slane %v153, %v159
    %v162 = vunpack.c.l.s4 1966171168
    %v163 = vunpack.c.0.s8 %v162
    %v164 = vlaneseq
    %v165 = vshrl.u32 %v164, 7
    %v166 = vsub.s32 %v163, %v165
    %v167 = vrot.slane %v160, %v166
    %s170 = scalar_lea.vmem %s1, 1
    %171 = vst.msk [vmem:[%s170] ss:$2 sm:$0x3] %vm130, %v152
    %s172 = scalar_lea.vmem %s1, 5
    %173 = vst.msk [vmem:[%s172] ss:$2 sm:$0x3] %vm130, %v167
    // Predicated region
    $region10: #{spatial_attention.3} parent=1 // pred_check
      _
    $region11: #{spatial_attention.3} parent=1 // pred_check_branch
      %175 = sbr.rel (0) target = $region13
    $region12: #{spatial_attention.3} parent=1 // pred_region
      _
    $region13: #{spatial_attention.3} parent=1 // pred_fallthru
      _
    // Predicated region
    $region14: #{spatial_attention.3} parent=1 // pred_check
      _
    $region15: #{spatial_attention.3} parent=1 // pred_check_branch
      %177 = sbr.rel (0) target = $region17
    $region16: #{spatial_attention.3} parent=1 // pred_region
      _
    $region17: #{spatial_attention.3} parent=1 // pred_fallthru
      _
    %178 = vsyncpa [#allocation3], 1

// kernel: spatial_attention.5
$region0: #{spatial_attention.5}
  #allocation0 [shape = 'u32[]', space=smem, size = 0x4, offset = 0x4, fixed_abs, tag = 'smem constant byte address 0x4 - core index']
  #allocation1 [shape = 'u32[144,128]{1,0:T(1,128)}', space=vmem, size = 0x12000, scoped, tag = 'internal scratch']
  %s0 = inlined_call_operand.vmem [shape: f32[2,1,256], index: 0, kind: input, shape index: {}]
  %s1 = inlined_call_operand.vmem [shape: f32[2,4,256], index: 1, kind: input, shape index: {}]
  %s2 = inlined_call_operand.hbm [shape: f32[2,4,256], index: 2, kind: output, shape index: {}]
  %s3 = sld [smem:[#allocation0]]
  $region18: #{spatial_attention.5} parent=0
    _
  %s5 = ssub.s32 1, %s3
  %s6 = scalar_select 0, %s5, %s3
  $region1: #{spatial_attention.5} parent=0
    #allocation2 [shape = 'u8[8192]{0}', space=vmem, size = 0x2000, scoped, tag = 'output window, operand 0, single buffered']
    #allocation3 [shape = 's32[1]{0}', space=sflag, size = 0x4, scoped, tag = 'scoped memory for spatial_attention.5']
    %7 = vsyncpa [#allocation3], 0
    // Predicated region
    $region2: #{spatial_attention.5} parent=1 // pred_check
      _
    $region3: #{spatial_attention.5} parent=1 // pred_check_branch
      %9 = sbr.rel (0) target = $region5
    $region4: #{spatial_attention.5} parent=1 // pred_region
      _
    $region5: #{spatial_attention.5} parent=1 // pred_fallthru
      _
    // Predicated region
    $region6: #{spatial_attention.5} parent=1 // pred_check
      _
    $region7: #{spatial_attention.5} parent=1 // pred_check_branch
      %11 = sbr.rel (0) target = $region9
    $region8: #{spatial_attention.5} parent=1 // pred_region
      _
    $region9: #{spatial_attention.5} parent=1 // pred_fallthru
      _
    %v12 = vld [vmem:[%s1] sm:$0xff]
    %v13 = vld [vmem:[%s1 + $0x8] sm:$0xff]
    %v14 = vld [vmem:[%s0] sm:$0x3]
    %v15 = vld [vmem:[%s0 + $0x2] sm:$0x3]
    %v18 = vlaneseq
    %v19 = vshrl.u32 %v18, 7
    %v20 = vsub.s32 0, %v19
    %v21 = vrot.slane %v14, %v20
    %v22 = vlaneseq
    %v23 = vshrl.u32 %v22, 7
    %v24 = vsub.s32 1, %v23
    %v25 = vrot.slane %v14, %v24
    %v26 = vlaneseq
    %v27 = vshrl.u32 %v26, 7
    %v28 = vsub.s32 0, %v27
    %v29 = vrot.slane %v15, %v28
    %v30 = vlaneseq
    %v31 = vshrl.u32 %v30, 7
    %v32 = vsub.s32 1, %v31
    %v33 = vrot.slane %v15, %v32
    %v34 = vcombine.low %v21, %v25
    %v35 = vcombine.low %v29, %v33
    %v38 = vmul.f32 %v12, %v34
    %v39 = vmul.f32 %v13, %v35
    %40 = vst [vmem:[#allocation2] sm:$0xff] %v38
    %41 = vst [vmem:[#allocation2 + $0x8] sm:$0xff] %v39
    // Predicated region
    $region10: #{spatial_attention.5} parent=1 // pred_check
      _
    $region11: #{spatial_attention.5} parent=1 // pred_check_branch
      %43 = sbr.rel (0) target = $region13
    $region12: #{spatial_attention.5} parent=1 // pred_region
      %s45 = ssub.s32 256, 256
      %46 = vsyncadd [#allocation3], %s45
      %s47 = sshll.u32 [#allocation2], 4
      %s48 = int_to_ptr.vmem [resolvable:$true] %s47
      %53 = dma.vmem_to_hbm [thread:$0]  %s48, 256, %s2, [#allocation3], 128, 128, 8
    $region13: #{spatial_attention.5} parent=1 // pred_fallthru
      _
    // Predicated region
    $region14: #{spatial_attention.5} parent=1 // pred_check
      _
    $region15: #{spatial_attention.5} parent=1 // pred_check_branch
      %55 = sbr.rel (0) target = $region17
    $region16: #{spatial_attention.5} parent=1 // pred_region
      %56 = dma.done [#allocation3], 256
    $region17: #{spatial_attention.5} parent=1 // pred_fallthru
      _
    %57 = vsyncpa [#allocation3], 1

// kernel: spatial_attention.4
$region0: #{spatial_attention.4}
  #allocation0 [shape = 'u32[]', space=smem, size = 0x4, offset = 0x4, fixed_abs, tag = 'smem constant byte address 0x4 - core index']
  #allocation1 [shape = 'u32[144,128]{1,0:T(1,128)}', space=vmem, size = 0x12000, scoped, tag = 'internal scratch']
  %s0 = inlined_call_operand.vmem [shape: f32[2,7], index: 0, kind: input, shape index: {}]
  %s1 = inlined_call_operand.vmem [shape: f32[2,2,262], index: 1, kind: input, shape index: {}]
  %s2 = inlined_call_operand.vmem [shape: f32[2,1,256], index: 2, kind: output, shape index: {}]
  %s3 = sld [smem:[#allocation0]]
  $region45: #{spatial_attention.4} parent=0
    _
  %s5 = ssub.s32 1, %s3
  %s6 = scalar_select 0, %s5, %s3
  $region1: #{spatial_attention.4} parent=0
    #allocation2 [shape = 'u8[1024]{0}', space=smem, size = 0x400, scoped, tag = 'input window, operand 0, single buffered']
    #allocation3 [shape = 's32[2]{0}', space=sflag, size = 0x8, scoped, tag = 'scoped memory for spatial_attention.4']
    %7 = vsyncpa [#allocation3], 0
    loop: start=0, step=1, limit=4
    $region2: #{spatial_attention.4} parent=1 // loop_pre_header
      _
    $region3: #{spatial_attention.4} parent=1 // loop_header
      %s9 = sphi 0, %s13
      %p10 = scmp.ge.s32.totalorder %s9, 4
      %s17 = sphi 0, %s17
      %s19 = sphi 0, %s17
      %s20 = sphi 0, %s19
      %s34 = sphi 0, %s20
      %s40 = sphi 0, %s42
      %s43 = sphi 0, %s40
      %s44 = sphi 0, %s43
      %s60 = sphi 0, %s44
      %s66 = sphi 0, %s68
      %s69 = sphi 0, %s66
      %s70 = sphi 0, %s69
      %s86 = sphi 0, %s70
    $region4: #{spatial_attention.4} parent=1 // loop_header_branch
      %12 = sbr.rel (%p10) target = $region8
    $region5: #{spatial_attention.4} parent=1 // loop_body
      %s14 = ssub.s32 %s9, 1
      %s15 = ssub.s32 %s9, 2
      %s16 = sadd.s32 %s9, 1
      %s18 = sadd.s32 %s17, 1
      %p21 = scmp.eq.s32.totalorder %s9, 1
      %p22 = scmp.ne.s32.totalorder %s17, %s19
      %p23 = scmp.eq.s32.totalorder %s9, 0
      %p24 = por %p22, %p23
      %p25 = scmp.ne.s32.totalorder %s17, %s19
      %p26 = scmp.eq.s32.totalorder %s14, 1
      %p27 = por %p25, %p26
      %p28 = scmp.ne.s32.totalorder %s19, %s20
      %p29 = scmp.eq.s32.totalorder %s14, 0
      %p30 = por %p28, %p29
      %p31 = scmp.ne.s32.totalorder %s19, %s20
      %p32 = scmp.eq.s32.totalorder %s15, 1
      %p33 = por %p31, %p32
      %p35 = scmp.ne.s32.totalorder %s20, %s34
      %p36 = scmp.eq.s32.totalorder %s15, 0
      %p37 = por %p35, %p36
      %s38 = ssub.s32 %s9, %s16
      %p39 = scmp.eq.s32.totalorder %s38, 0
      %s41 = sadd.s32 %s40, 1
      %s42 = scalar_select %p39, %s40, %s41
      %p45 = pneg %p39
      %p46 = scmp.eq.s32.totalorder %s9, 1
      %p47 = por %p45, %p46
      %p48 = scmp.ne.s32.totalorder %s40, %s43
      %p49 = scmp.eq.s32.totalorder %s9, 0
      %p50 = por %p48, %p49
      %p51 = scmp.ne.s32.totalorder %s40, %s43
      %p52 = scmp.eq.s32.totalorder %s14, 1
      %p53 = por %p51, %p52
      %p54 = scmp.ne.s32.totalorder %s43, %s44
      %p55 = scmp.eq.s32.totalorder %s14, 0
      %p56 = por %p54, %p55
      %p57 = scmp.ne.s32.totalorder %s43, %s44
      %p58 = scmp.eq.s32.totalorder %s15, 1
      %p59 = por %p57, %p58
      %p61 = scmp.ne.s32.totalorder %s44, %s60
      %p62 = scmp.eq.s32.totalorder %s15, 0
      %p63 = por %p61, %p62
      %s64 = ssub.s32 %s9, %s16
      %p65 = scmp.eq.s32.totalorder %s64, 0
      %s67 = sadd.s32 %s66, 1
      %s68 = scalar_select %p65, %s66, %s67
      %p71 = pneg %p65
      %p72 = scmp.eq.s32.totalorder %s9, 1
      %p73 = por %p71, %p72
      %p74 = scmp.ne.s32.totalorder %s66, %s69
      %p75 = scmp.eq.s32.totalorder %s9, 0
      %p76 = por %p74, %p75
      %p77 = scmp.ne.s32.totalorder %s66, %s69
      %p78 = scmp.eq.s32.totalorder %s14, 1
      %p79 = por %p77, %p78
      %p80 = scmp.ne.s32.totalorder %s69, %s70
      %p81 = scmp.eq.s32.totalorder %s14, 0
      %p82 = por %p80, %p81
      %p83 = scmp.ne.s32.totalorder %s69, %s70
      %p84 = scmp.eq.s32.totalorder %s15, 1
      %p85 = por %p83, %p84
      %p87 = scmp.ne.s32.totalorder %s70, %s86
      %p88 = scmp.eq.s32.totalorder %s15, 0
      %p89 = por %p87, %p88
      %p90 = scmp.le.s32.totalorder 1, %s9
      %p91 = scmp.lt.s32.totalorder %s9, 3
      %p92 = pnand %p90, %p91
      %p93 = pneg %p92
      // Predicated region
      $region9: #{spatial_attention.4} parent=5 // pred_check
        _
      $region10: #{spatial_attention.4} parent=5 // pred_check_branch
        %95 = sbr.rel (%p92) target = $region12
      $region11: #{spatial_attention.4} parent=5 // pred_region
        %s96 = ssub.s32 %s9, 1
        // Predicated region
        $region13: #{spatial_attention.4} parent=11 // pred_check
          %p97 = pneg %p30
        $region14: #{spatial_attention.4} parent=11 // pred_check_branch
          %99 = sbr.rel (%p97) target = $region16
        $region15: #{spatial_attention.4} parent=11 // pred_region
          %s101 = ssub.s32 32, 32
          %102 = vsyncadd [#allocation3], %s101
          %s104 = sshll.u32 %s0, 4
          %s105 = int_to_ptr.vmem [resolvable:$true] %s104
          %107 = dma.vmem_to_smem %s105, 32, [#allocation2], [#allocation3]
        $region16: #{spatial_attention.4} parent=11 // pred_fallthru
          _
      $region12: #{spatial_attention.4} parent=5 // pred_fallthru
        _
      %p108 = scmp.lt.s32.totalorder %s9, 2
      // Predicated region
      $region17: #{spatial_attention.4} parent=5 // pred_check
        %p109 = pneg %p108
      $region18: #{spatial_attention.4} parent=5 // pred_check_branch
        %111 = sbr.rel (%p109) target = $region20
      $region19: #{spatial_attention.4} parent=5 // pred_region
        // Predicated region
        $region21: #{spatial_attention.4} parent=19 // pred_check
          %p112 = pneg %p50
        $region22: #{spatial_attention.4} parent=19 // pred_check_branch
          %114 = sbr.rel (%p112) target = $region24
        $region23: #{spatial_attention.4} parent=19 // pred_region
          %p115 = scmp.lt.s32.totalorder %s9, 1
          %s116 = scalar_select %p115, %s9, 1
          %s117 = smul.addr %s116, 3
          %s118 = smul.addr %s117, 2
          %s119 = scalar_lea.vmem %s1, %s118
        $region24: #{spatial_attention.4} parent=19 // pred_fallthru
          _
      $region20: #{spatial_attention.4} parent=5 // pred_fallthru
        _
      %p120 = scmp.le.s32.totalorder 1, %s9
      %p121 = scmp.lt.s32.totalorder %s9, 3
      %p122 = pnand %p120, %p121
      %p123 = pneg %p122
      // Predicated region
      $region25: #{spatial_attention.4} parent=5 // pred_check
        _
      $region26: #{spatial_attention.4} parent=5 // pred_check_branch
        %125 = sbr.rel (%p122) target = $region28
      $region27: #{spatial_attention.4} parent=5 // pred_region
        %s126 = ssub.s32 %s9, 1
        // Predicated region
        $region29: #{spatial_attention.4} parent=27 // pred_check
          %p127 = pneg %p30
        $region30: #{spatial_attention.4} parent=27 // pred_check_branch
          %129 = sbr.rel (%p127) target = $region32
        $region31: #{spatial_attention.4} parent=27 // pred_region
          %130 = dma.done [#allocation3], 32
        $region32: #{spatial_attention.4} parent=27 // pred_fallthru
          _
        %131 = sfence
        %p132 = pneg %p30
        %p133 = pneg %p27
        %p134 = scmp.lt.s32.totalorder %s14, 1
        %s135 = scalar_select %p134, %s14, 1
        %s136 = smul.addr %s135, 3
        %s137 = smul.addr %s136, 2
        %s138 = scalar_lea.vmem %s1, %s137
        %p139 = pneg %p56
        %p140 = pneg %p53
        %p141 = pneg %p82
        %p142 = pneg %p79
        %p143 = scmp.lt.s32.totalorder %s14, 1
        %s144 = scalar_select %p143, %s14, 1
        %s145 = smul.addr %s144, 2
        %s146 = scalar_lea.vmem %s2, %s145
        %p147 = scmp.lt.s32.totalorder %s14, 1
        %s148 = scalar_select %p147, %s14, 1
        %s149 = smul.addr %s148, 3
        %s150 = smul.addr %s149, 2
        %s151 = scalar_lea.vmem %s1, %s150
        %p152 = scmp.lt.s32.totalorder %s14, 1
        %s153 = scalar_select %p152, %s14, 1
        %s154 = smul.addr %s153, 2
        %s155 = scalar_lea.vmem %s2, %s154
        %v156 = vld [vmem:[%s151] sm:$0x3f]
        %s157 = sld [smem:[#allocation2]]
        %v158 = vstv %s157
        %v159 = vmul.f32 %v158, %v156
        %v160 = vadd.f32 %v159, 0.0
        %s161 = sld [smem:[#allocation2 + $0x80]]
        %v162 = vstv %s161
        %v163 = vmul.f32 %v162, %v156
        %v165 = vrot.slane %v163, 7
        %v166 = vrot.slane %v165, 2
        %v168 = vadd.f32 %v160, %v166
        %s169 = sld [smem:[#allocation2 + $0x1]]
        %v170 = vstv %s169
        %v171 = vmul.f32 %v170, %v156
        %173 = vrot.lane.b32.xlu0 %v171, 127
        %v174 = vpop.permute.xlu0 %173
        %v175 = vrot.slane %v174, 2
        %vm176 = vcmask 1039360
        %v177 = vsel %vm176, %v174, %v175
        %v179 = vadd.f32 %v168, %v177
        %s180 = sld [smem:[#allocation2 + $0x81]]
        %v181 = vstv %s180
        %v182 = vmul.f32 %v181, %v156
        %v184 = vrot.slane %v182, 7
        %v185 = vrot.slane %v184, 2
        %186 = vrot.lane.b32.xlu0 %v185, 127
        %v187 = vpop.permute.xlu0 %186
        %v188 = vrot.slane %v187, 2
        %v189 = vsel %vm176, %v187, %v188
        %v191 = vadd.f32 %v179, %v189
        %s192 = sld [smem:[#allocation2 + $0x2]]
        %v193 = vstv %s192
        %v194 = vmul.f32 %v193, %v156
        %196 = vrot.lane.b32.xlu0 %v194, 126
        %v197 = vpop.permute.xlu0 %196
        %v198 = vrot.slane %v197, 2
        %vm199 = vcmask 1031168
        %v200 = vsel %vm199, %v197, %v198
        %v202 = vadd.f32 %v191, %v200
        %s203 = sld [smem:[#allocation2 + $0x82]]
        %v204 = vstv %s203
        %v205 = vmul.f32 %v204, %v156
        %v207 = vrot.slane %v205, 7
        %v208 = vrot.slane %v207, 2
        %209 = vrot.lane.b32.xlu0 %v208, 126
        %v210 = vpop.permute.xlu0 %209
        %v211 = vrot.slane %v210, 2
        %v212 = vsel %vm199, %v210, %v211
        %v214 = vadd.f32 %v202, %v212
        %s215 = sld [smem:[#allocation2 + $0x3]]
        %v216 = vstv %s215
        %v217 = vmul.f32 %v216, %v156
        %219 = vrot.lane.b32.xlu0 %v217, 125
        %v220 = vpop.permute.xlu0 %219
        %v221 = vrot.slane %v220, 2
        %vm222 = vcmask 1022976
        %v223 = vsel %vm222, %v220, %v221
        %v225 = vadd.f32 %v214, %v223
        %s226 = sld [smem:[#allocation2 + $0x83]]
        %v227 = vstv %s226
        %v228 = vmul.f32 %v227, %v156
        %v230 = vrot.slane %v228, 7
        %v231 = vrot.slane %v230, 2
        %232 = vrot.lane.b32.xlu0 %v231, 125
        %v233 = vpop.permute.xlu0 %232
        %v234 = vrot.slane %v233, 2
        %v235 = vsel %vm222, %v233, %v234
        %v237 = vadd.f32 %v225, %v235
        %s238 = sld [smem:[#allocation2 + $0x4]]
        %v239 = vstv %s238
        %v240 = vmul.f32 %v239, %v156
        %242 = vrot.lane.b32.xlu0 %v240, 124
        %v243 = vpop.permute.xlu0 %242
        %v244 = vrot.slane %v243, 2
        %vm245 = vcmask 1014784
        %v246 = vsel %vm245, %v243, %v244
        %v248 = vadd.f32 %v237, %v246
        %s249 = sld [smem:[#allocation2 + $0x84]]
        %v250 = vstv %s249
        %v251 = vmul.f32 %v250, %v156
        %v253 = vrot.slane %v251, 7
        %v254 = vrot.slane %v253, 2
        %255 = vrot.lane.b32.xlu0 %v254, 124
        %v256 = vpop.permute.xlu0 %255
        %v257 = vrot.slane %v256, 2
        %v258 = vsel %vm245, %v256, %v257
        %v260 = vadd.f32 %v248, %v258
        %s261 = sld [smem:[#allocation2 + $0x5]]
        %v262 = vstv %s261
        %v263 = vmul.f32 %v262, %v156
        %265 = vrot.lane.b32.xlu0 %v263, 123
        %v266 = vpop.permute.xlu0 %265
        %v267 = vrot.slane %v266, 2
        %vm268 = vcmask 1006592
        %v269 = vsel %vm268, %v266, %v267
        %v271 = vadd.f32 %v260, %v269
        %s272 = sld [smem:[#allocation2 + $0x85]]
        %v273 = vstv %s272
        %v274 = vmul.f32 %v273, %v156
        %v276 = vrot.slane %v274, 7
        %v277 = vrot.slane %v276, 2
        %278 = vrot.lane.b32.xlu0 %v277, 123
        %v279 = vpop.permute.xlu0 %278
        %v280 = vrot.slane %v279, 2
        %v281 = vsel %vm268, %v279, %v280
        %v283 = vadd.f32 %v271, %v281
        %s284 = sld [smem:[#allocation2 + $0x6]]
        %v285 = vstv %s284
        %v286 = vmul.f32 %v285, %v156
        %288 = vrot.lane.b32.xlu0 %v286, 122
        %v289 = vpop.permute.xlu0 %288
        %v290 = vrot.slane %v289, 2
        %vm291 = vcmask 998400
        %v292 = vsel %vm291, %v289, %v290
        %v294 = vadd.f32 %v283, %v292
        %s295 = sld [smem:[#allocation2 + $0x86]]
        %v296 = vstv %s295
        %v297 = vmul.f32 %v296, %v156
        %v299 = vrot.slane %v297, 7
        %v300 = vrot.slane %v299, 2
        %301 = vrot.lane.b32.xlu0 %v300, 122
        %v302 = vpop.permute.xlu0 %301
        %v303 = vrot.slane %v302, 2
        %v304 = vsel %vm291, %v302, %v303
        %v306 = vadd.f32 %v294, %v304
        %v307 = vxor.u32 %v306, 2147483648
        %v308 = vmul.f32 %v307, 1.442695
        %v309 = vpow.pop %v308
        %v310 = vadd.f32 %v309, 1.0
        %v311 = vrcp.pop %v310
        %v312 = vmul.f32 1.0, %v311
        %v315 = vunpack.c.l.s4 1966171168
        %v316 = vunpack.c.0.s8 %v315
        %v317 = vlaneseq
        %v318 = vshrl.u32 %v317, 7
        %v319 = vsub.s32 %v316, %v318
        %v320 = vrot.slane %v312, %v319
        %v322 = vlaneseq
        %vm323 = vcmp.ge.s32.totalorder %v322, 0
        %vm324 = vcmp.lt.s32.totalorder %v322, 256
        %vm325 = vmand %vm323, %vm324
        %326 = vst.msk [vmem:[%s155] sm:$0x3] %vm325, %v320
        %p327 = scmp.lt.s32.totalorder %s14, 1
        %s328 = scalar_select %p327, %s14, 1
        %s329 = smul.addr %s328, 2
        %s330 = scalar_lea.vmem %s2, %s329
        // Predicated region
        $region33: #{spatial_attention.4} parent=27 // pred_check
          %p331 = pneg %p79
        $region34: #{spatial_attention.4} parent=27 // pred_check_branch
          %333 = sbr.rel (%p331) target = $region36
        $region35: #{spatial_attention.4} parent=27 // pred_region
          _
        $region36: #{spatial_attention.4} parent=27 // pred_fallthru
          _
      $region28: #{spatial_attention.4} parent=5 // pred_fallthru
        _
      %p334 = scmp.le.s32.totalorder 2, %s9
      // Predicated region
      $region37: #{spatial_attention.4} parent=5 // pred_check
        %p335 = pneg %p334
      $region38: #{spatial_attention.4} parent=5 // pred_check_branch
        %337 = sbr.rel (%p335) target = $region40
      $region39: #{spatial_attention.4} parent=5 // pred_region
        %s338 = ssub.s32 %s9, 2
        // Predicated region
        $region41: #{spatial_attention.4} parent=39 // pred_check
          %p339 = pneg %p85
        $region42: #{spatial_attention.4} parent=39 // pred_check_branch
          %341 = sbr.rel (%p339) target = $region44
        $region43: #{spatial_attention.4} parent=39 // pred_region
          %p342 = scmp.lt.s32.totalorder %s15, 1
          %s343 = scalar_select %p342, %s15, 1
          %s344 = smul.addr %s343, 2
          %s345 = scalar_lea.vmem %s2, %s344
        $region44: #{spatial_attention.4} parent=39 // pred_fallthru
          _
      $region40: #{spatial_attention.4} parent=5 // pred_fallthru
        _
    $region6: #{spatial_attention.4} parent=1 // loop_footer
      %s13 = sadd.s32 1, %s9
    $region7: #{spatial_attention.4} parent=1 // loop_footer_branch
      %8 = sbr.rel target = $region3
    $region8: #{spatial_attention.4} parent=1 // loop_exit
      _
    %346 = vsyncpa [#allocation3], 1
    %s347 = scalar_lea.sflag [#allocation3], 1
    %348 = vsyncpa %s347, 1

</llo_original>
